<compile_context>
chip_gen: v7x
topology: tpu7x:2x2x1
jax: 0.10.0
libtpu: 0.0.40
codegen_flags: <defaults>
</compile_context>

<pallas_src>
import functools

import jax
import jax.numpy as jnp
from jax.experimental import pallas as pl
from jax.experimental.pallas import tpu as pltpu

_SPLITS = (44, 44, 44, 45, 44, 34)  # documented column split; the concat is an identity
_LANE = 128
_SUBLANE = 8


def _round_up(x, m):
    return ((x + m - 1) // m) * m


def _cdiv(a, b):
    return -(-a // b)


def _vmem_capacity_bytes():
    """Physical per-core VMEM (64 MiB/TC on v7x, 128 MiB on v5e/v6e)."""
    try:
        cap = getattr(pltpu.get_tpu_info(), "vmem_capacity_bytes", None)
        if cap:
            return int(cap)
    except Exception:
        pass
    return 64 * 1024 * 1024  # conservative default = v7x per-TensorCore VMEM


def _balanced_block_rows(n, block_rows):
    """Sublane-aligned row block minimizing pad waste (N=257 -> bn=136, not 256+256)."""
    n8 = _round_up(max(n, 1), _SUBLANE)
    if n8 <= block_rows:
        return n8
    nblocks = _cdiv(n, block_rows)
    return _round_up(_cdiv(n, nblocks), _SUBLANE)


# ---------------------------------------------------------------------------
# Strategy A: resident table, one-hot matmul gather.
# ---------------------------------------------------------------------------
def _onehot_gather_kernel(idx_ref, table_ref, out_ref):
    # idx_ref:   VMEM int32 [bn, 1]   (lookup indices for this output block)
    # table_ref: VMEM       [V, D]    (full table, resident, single-buffered)
    # out_ref:   VMEM       [bn, D]
    bn = out_ref.shape[0]
    v = table_ref.shape[0]
    idx = jnp.clip(idx_ref[...], 0, v - 1)                   # clip folded into kernel
    iota = jax.lax.broadcasted_iota(jnp.int32, (bn, v), 1)    # [bn, V]
    one_hot = (iota == idx).astype(table_ref.dtype)           # 0/1 exact in bf16 and f32
    # One MXU pass per block; HIGHEST precision so an f32 table is not
    # truncated to bf16 passes -> result is gather-exact.  Store is lane-dense.
    out_ref[...] = jnp.dot(
        one_hot, table_ref[...],
        precision=jax.lax.Precision.HIGHEST,
        preferred_element_type=jnp.float32).astype(out_ref.dtype)


# ---------------------------------------------------------------------------
# Strategy B: table in HBM, scalar-prefetch indices, double-buffered row DMA.
# ---------------------------------------------------------------------------
def _dma_gather_kernel(idx_smem, table_hbm, out_ref, rowbuf, sem):
    # idx_smem:  SMEM int32 [n_pad]   (scalar-prefetched, pre-clipped indices)
    # table_hbm: HBM        [V, D]    (memory_space=pl.ANY; never copied whole)
    # out_ref:   VMEM       [bn, D]
    # rowbuf:    VMEM       [2, 1, D] (double-buffered row landing zone)
    # sem:       DMA sems   [2]
    bn = out_ref.shape[0]
    base = pl.program_id(0) * bn

    def start(r, slot):
        pltpu.make_async_copy(
            table_hbm.at[pl.ds(idx_smem[base + r], 1), :],
            rowbuf.at[slot], sem.at[slot]).start()

    start(0, 0)

    def body(r, carry):
        slot = r % 2
        pltpu.make_async_copy(
            table_hbm.at[pl.ds(0, 1), :], rowbuf.at[slot], sem.at[slot]).wait()

        @pl.when(r + 1 < bn)
        def _():
            start(r + 1, 1 - slot)   # prefetch next row while storing this one

        out_ref[pl.ds(r, 1), :] = rowbuf[slot]
        return carry

    jax.lax.fori_loop(0, bn, body, 0)


# ---------------------------------------------------------------------------
# Wrapper with trace-time strategy dispatch.
# ---------------------------------------------------------------------------
@functools.partial(jax.jit, static_argnames=("block_rows", "strategy"))
def mapping_encoding_forward(pretrained, poses, *, block_rows=256, strategy="auto"):
    """Equivalent of MappingEncoding.forward: cat([emb_k(poses) for k], dim=1)."""
    assert strategy in ("auto", "onehot", "gather")
    V, D = pretrained.shape
    N = poses.shape[0]
    itemsize = jnp.dtype(pretrained.dtype).itemsize

    d_pad = _round_up(D, _LANE)        # VMEM lays the last dim out in 128-lane tiles
    v_sub = _round_up(V, _SUBLANE)
    v_lane = _round_up(V, _LANE)

    # Per-core budget with headroom (on v7x the parallel axis replicates the
    # resident table into each TensorCore's 64 MiB VMEM).
    cap = int(0.80 * _vmem_capacity_bytes())

    # -------- strategy-A footprint: everything that actually lives in VMEM ----
    bn_a = _balanced_block_rows(N, block_rows)
    # Bound the [bn, V] one-hot working set to ~4 MiB (f32, lane-padded V).
    max_bn = max(_SUBLANE, (4 * 1024 * 1024 // (v_lane * 4)) // _SUBLANE * _SUBLANE)
    bn_a = max(_SUBLANE, min(bn_a, max_bn))
    tbl_bytes = v_sub * d_pad * itemsize                    # resident, single-buffered
    out_bytes = 2 * bn_a * d_pad * itemsize                 # double-buffered output blocks
    idx_bytes = 2 * bn_a * _LANE * 4                        # (bn,1) i32 blocks, lane-padded
    onehot_bytes = 2 * bn_a * v_lane * 4                    # iota + one-hot working set
    acc_bytes = bn_a * d_pad * 4 if itemsize < 4 else 0     # f32 accumulator for bf16 out
    need_a = tbl_bytes + out_bytes + idx_bytes + onehot_bytes + acc_bytes

    fits = int(1.15 * need_a) <= cap
    sparse = V >= 1024 and _round_up(N, _SUBLANE) * 16 < V  # N*D << V*D: row DMA wins

    use_onehot = strategy == "onehot" or (strategy == "auto" and fits and not sparse)

    idx = poses.astype(jnp.int32)

    if use_onehot:
        bn = bn_a
        n_pad = _round_up(N, bn)
        if n_pad != N:
            idx = jnp.pad(idx, (0, n_pad - N))
        idx = idx.reshape(n_pad, 1)
        vmem_limit = min(cap, max(int(1.25 * need_a), 16 * 1024 * 1024))
        out = pl.pallas_call(
            _onehot_gather_kernel,
            grid=(n_pad // bn,),
            in_specs=[
                # Per-block lookup indices.
                pl.BlockSpec((bn, 1), lambda i: (i, 0)),
                # Full table; constant block index across the grid -> keep a
                # single VMEM buffer instead of the default double buffer.
                pl.BlockSpec((V, D), lambda i: (0, 0),
                             pipeline_mode=pl.Buffered(buffer_count=1)),
            ],
            out_specs=pl.BlockSpec((bn, D), lambda i: (i, 0)),
            out_shape=jax.ShapeDtypeStruct((n_pad, D), pretrained.dtype),
            compiler_params=pltpu.CompilerParams(
                dimension_semantics=("parallel",),
                vmem_limit_bytes=vmem_limit),
        )(idx, pretrained)
        return out[:N]

    # -------- strategy B: HBM-resident table + scalar-prefetch row DMA gather --
    bn = _balanced_block_rows(N, block_rows)
    n_pad = _round_up(N, bn)
    # Clip BEFORE the DMA uses the indices as addresses (OOB DMA is unsafe).
    idx = jnp.clip(idx, 0, V - 1)
    if n_pad != N:
        idx = jnp.pad(idx, (0, n_pad - N))
    out = pl.pallas_call(
        _dma_gather_kernel,
        grid_spec=pltpu.PrefetchScalarGridSpec(
            num_scalar_prefetch=1,
            grid=(n_pad // bn,),
            in_specs=[pl.BlockSpec(memory_space=pl.ANY)],
            out_specs=pl.BlockSpec((bn, D), lambda i, idx_ref: (i, 0)),
            scratch_shapes=[
                pltpu.VMEM((2, 1, D), pretrained.dtype),
                pltpu.SemaphoreType.DMA((2,)),
            ]),
        out_shape=jax.ShapeDtypeStruct((n_pad, D), pretrained.dtype),
        compiler_params=pltpu.CompilerParams(
            dimension_semantics=("arbitrary",)),
    )(idx, pretrained)
    return out[:N]


def _reference(pretrained, poses):
    """Built exactly like the torch module: 7 per-chunk lookups, concat on dim=1."""
    chunks, start = [], 0
    for w in _SPLITS:
        chunks.append(pretrained[:, start:start + w][poses])
        start += w
    chunks.append(pretrained[:, start:][poses])
    return jnp.concatenate(chunks, axis=1)


if __name__ == "__main__":
    key = jax.random.PRNGKey(0)
    k_tab, k_idx, k_tab2, k_idx2, k_idx3 = jax.random.split(key, 5)

    # 1) Dense/small config: auto -> resident-table one-hot matmul path.
    V, D, N = 16, 384, 13          # D > 255 so the 7th chunk is non-empty; N not a multiple of 8
    table = jax.random.normal(k_tab, (V, D), dtype=jnp.float32)
    poses = jax.random.randint(k_idx, (N,), 0, V, dtype=jnp.int32)
    out = jax.block_until_ready(mapping_encoding_forward(table, poses))
    assert out.shape == (N, D), out.shape
    assert jnp.allclose(out, _reference(table, poses)), "one-hot path mismatch"

    # 2) Multi-block one-hot path with balanced bn (N=300, block_rows=128 -> 3 blocks of 104).
    poses3 = jax.random.randint(k_idx3, (300,), 0, V, dtype=jnp.int32)
    out3 = jax.block_until_ready(
        mapping_encoding_forward(table, poses3, block_rows=128, strategy="onehot"))
    assert out3.shape == (300, D), out3.shape
    assert jnp.allclose(out3, _reference(table, poses3)), "multi-block one-hot mismatch"

    # 3) Sparse / large-table path: HBM table + scalar-prefetch double-buffered row DMA.
    V2 = 512
    table2 = jax.random.normal(k_tab2, (V2, D), dtype=jnp.float32)
    poses2 = jax.random.randint(k_idx2, (N,), 0, V2, dtype=jnp.int32)
    out2 = jax.block_until_ready(
        mapping_encoding_forward(table2, poses2, strategy="gather"))
    assert out2.shape == (N, D), out2.shape
    assert jnp.allclose(out2, _reference(table2, poses2)), "DMA gather path mismatch"

    print("KERNEL_OK")
</pallas_src>

<mosaic_0001>
module attributes {stable_mosaic.version = 11 : i64} {
  func.func @_onehot_gather_kernel(%arg0: i32, %arg1: memref<16x1xi32, #tpu.memory_space<vmem>>, %arg2: memref<16x384xf32, #tpu.memory_space<vmem>>, %arg3: memref<16x384xf32, #tpu.memory_space<vmem>>) attributes {dimension_semantics = [#tpu.dimension_semantics<parallel>], iteration_bounds = array<i64: 1>, scalar_prefetch = 0 : i64, scratch_operands = 0 : i64, tpu.core_type = #tpu.core_type<tc>, window_params = [{transform_indices = @transform_0, window_bounds = array<i64: 16, 1>}, {pipeline_mode = #tpu.pipeline_mode<synchronous>, transform_indices = @transform_1, window_bounds = array<i64: 16, 384>}, {transform_indices = @transform_2, window_bounds = array<i64: 16, 384>}]} {
    %c0 = arith.constant 0 : index
    %c0_0 = arith.constant 0 : index
    %0 = vector.load %arg1[%c0, %c0_0] : memref<16x1xi32, #tpu.memory_space<vmem>>, vector<16x1xi32>
    %c0_i32 = arith.constant 0 : i32
    %c15_i32 = arith.constant 15 : i32
    %1 = vector.broadcast %c0_i32 : i32 to vector<16x1xi32>
    %2 = arith.maxsi %1, %0 : vector<16x1xi32>
    %3 = vector.broadcast %c15_i32 : i32 to vector<16x1xi32>
    %4 = arith.minsi %3, %2 : vector<16x1xi32>
    %5 = tpu.iota {dimensions = array<i32: 1>} : vector<16x16xi32>
    %6 = vector.broadcast %4 : vector<16x1xi32> to vector<16x16xi32>
    %7 = arith.cmpi eq, %5, %6 : vector<16x16xi32>
    %8 = arith.extui %7 : vector<16x16xi1> to vector<16x16xi32>
    %9 = arith.sitofp %8 : vector<16x16xi32> to vector<16x16xf32>
    %c0_1 = arith.constant 0 : index
    %c0_2 = arith.constant 0 : index
    %10 = vector.load %arg2[%c0_1, %c0_2] : memref<16x384xf32, #tpu.memory_space<vmem>>, vector<16x384xf32>
    %cst = arith.constant dense<0.000000e+00> : vector<16x384xf32>
    %11 = tpu.matmul %9, %10, %cst {dimension_numbers = #tpu.dot_dimension_numbers<[1], [0], [0], [1], [0, 0, 1, 1], [], []>, precision = #tpu.contract_precision<fp32>} : vector<16x16xf32>, vector<16x384xf32>, vector<16x384xf32> -> vector<16x384xf32>
    %c0_3 = arith.constant 0 : index
    %c0_4 = arith.constant 0 : index
    %12 = vector.load %arg3[%c0_3, %c0_4] : memref<16x384xf32, #tpu.memory_space<vmem>>, vector<16x384xf32>
    tpu.vector_store %arg3[%c0_3, %c0_4], %11 {strides = array<i32>} : memref<16x384xf32, #tpu.memory_space<vmem>>, vector<16x384xf32>,
    return
  }
  func.func @transform_0(%arg0: i32) -> (i32, i32) {
    %c0_i32 = arith.constant 0 : i32
    %c0_i32_0 = arith.constant 0 : i32
    return %arg0, %c0_i32 : i32, i32
  }
  func.func @transform_1(%arg0: i32) -> (i32, i32) {
    %c0_i32 = arith.constant 0 : i32
    %c0_i32_0 = arith.constant 0 : i32
    %c0_i32_1 = arith.constant 0 : i32
    return %c0_i32, %c0_i32_0 : i32, i32
  }
  func.func @transform_2(%arg0: i32) -> (i32, i32) {
    %c0_i32 = arith.constant 0 : i32
    %c0_i32_0 = arith.constant 0 : i32
    return %arg0, %c0_i32 : i32, i32
  }
}

</mosaic_0001>

<llo_original>
// kernel: mapping_encoding_forward.1
$region0: #{mapping_encoding_forward.1}
  #allocation0 [shape = 'u32[]', space=smem, size = 0x4, offset = 0x4, fixed_abs, tag = 'smem constant byte address 0x4 - core index']
  #allocation1 [shape = 'u32[144,128]{1,0:T(1,128)}', space=vmem, size = 0x12000, scoped, tag = 'internal scratch']
  %s0 = inlined_call_operand.vmem [shape: s32[16,1], index: 0, kind: input, shape index: {}]
  %s1 = inlined_call_operand.hbm [shape: f32[16,384], index: 1, kind: input, shape index: {}]
  %s2 = inlined_call_operand.hbm [shape: f32[16,384], index: 2, kind: output, shape index: {}]
  %s3 = sld [smem:[#allocation0]]
  $region22: #{mapping_encoding_forward.1} parent=0
    _
  %s5 = ssub.s32 1, %s3
  %s6 = scalar_select 0, %s5, %s3
  $region1: #{mapping_encoding_forward.1} parent=0
    #allocation2 [shape = 'u8[24576]{0}', space=vmem, size = 0x6000, scoped, tag = 'input window, operand 1, single buffered']
    #allocation3 [shape = 's32[1]{0}', space=sflag, size = 0x4, scoped, tag = 'scoped memory for mapping_encoding_forward.1']
    #allocation4 [shape = 's32[1]{0}', space=sflag, size = 0x4, scoped, tag = 'scoped memory for mapping_encoding_forward.1']
    #allocation5 [shape = 'u8[24576]{0}', space=vmem, size = 0x6000, scoped, tag = 'output window, operand 0, single buffered']
    %7 = vsyncpa [#allocation3], 0
    %8 = vsyncpa [#allocation4], 0
    // Predicated region
    $region2: #{mapping_encoding_forward.1} parent=1 // pred_check
      _
    $region3: #{mapping_encoding_forward.1} parent=1 // pred_check_branch
      %10 = sbr.rel (0) target = $region5
    $region4: #{mapping_encoding_forward.1} parent=1 // pred_region
      _
    $region5: #{mapping_encoding_forward.1} parent=1 // pred_fallthru
      _
    // Predicated region
    $region6: #{mapping_encoding_forward.1} parent=1 // pred_check
      _
    $region7: #{mapping_encoding_forward.1} parent=1 // pred_check_branch
      %12 = sbr.rel (0) target = $region9
    $region8: #{mapping_encoding_forward.1} parent=1 // pred_region
      %s14 = ssub.s32 768, 768
      %15 = vsyncadd [#allocation3], %s14
      %s16 = sshll.u32 [#allocation2], 4
      %s17 = int_to_ptr.vmem [resolvable:$true] %s16
      %22 = dma.hbm_to_vmem [thread:$0]  %s1, 768, %s17, [#allocation3], 384, 384, 24
    $region9: #{mapping_encoding_forward.1} parent=1 // pred_fallthru
      _
    // Predicated region
    $region10: #{mapping_encoding_forward.1} parent=1 // pred_check
      _
    $region11: #{mapping_encoding_forward.1} parent=1 // pred_check_branch
      %24 = sbr.rel (0) target = $region13
    $region12: #{mapping_encoding_forward.1} parent=1 // pred_region
      %25 = dma.done [#allocation3], 768
    $region13: #{mapping_encoding_forward.1} parent=1 // pred_fallthru
      _
    %v26 = vld [vmem:[%s0] sm:$0xff]
    %v27 = vld [vmem:[%s0 + $0x8] sm:$0xff]
    %vm28 = vcmp.gt.s32.totalorder %v26, 0
    %v29 = vsel %vm28, %v26, 0
    %vm30 = vcmp.gt.s32.totalorder %v27, 0
    %v31 = vsel %vm30, %v27, 0
    %vm32 = vcmp.lt.s32.totalorder %v29, 15
    %v33 = vsel %vm32, %v29, 15
    %vm34 = vcmp.lt.s32.totalorder %v31, 15
    %v35 = vsel %vm34, %v31, 15
    %v36 = vlaneseq
    %v37 = vand.u32 %v36, 127
    %38 = vset.pattern.permute.xlu0 0
    %39 = vperm.xlu0 %38, %v33
    %v40 = vpop.permute.xlu0 %39
    %41 = vset.pattern.permute.xlu0 0
    %42 = vperm.xlu0 %41, %v35
    %v43 = vpop.permute.xlu0 %42
    %vm44 = vcmp.eq.s32.totalorder %v37, %v40
    %vm45 = vcmp.eq.s32.totalorder %v37, %v43
    %v46 = vsel %vm44, 1, 0
    %v47 = vsel %vm45, 1, 0
    %v48 = vcvt.s32.f32 %v46
    %v49 = vcvt.s32.f32 %v47
    %v50 = vld [vmem:[#allocation2] sm:$0xff]
    %v51 = vld [vmem:[#allocation2 + $0x8] sm:$0xff]
    %v52 = vld [vmem:[#allocation2 + $0x10] sm:$0xff]
    %v53 = vld [vmem:[#allocation2 + $0x18] sm:$0xff]
    %v54 = vld [vmem:[#allocation2 + $0x20] sm:$0xff]
    %v55 = vld [vmem:[#allocation2 + $0x28] sm:$0xff]
    %vm56 = vcmask 130048
    %v58 = vsel %vm56, %v48, 0
    %v61 = vsel %vm56, %v49, 0
    %v63 = vand.u32 %v51, 4294901760
    %64 = vmatprep.subr.mxu0 %v63
    %v65 = vand.u32 %v50, 4294901760
    %66 = vmatpush1.msra.mxu0 %v65
    %v67 = vand.u32 %v54, 4294901760
    %68 = vmatprep.subr.mxu0 %v67
    %v69 = vand.u32 %v53, 4294901760
    %70 = vmatpush1.msra.mxu0 %v69
    %71 = vmatprep.subr.mxu0 0.0
    %72 = vmatpush1.msra.mxu0 0.0
    %73 = vmatprep.subr.mxu0 0.0
    %74 = vmatpush1.msra.mxu0 0.0
    %75 = vmatprep.subr.mxu0 0.0
    %76 = vmatpush1.msra.mxu0 0.0
    %77 = vmatprep.subr.mxu0 0.0
    %78 = vmatpush1.msra.mxu0 0.0
    %79 = vmatprep.subr.mxu0 0.0
    %80 = vmatpush1.msra.mxu0 0.0
    %81 = vmatprep.subr.mxu0 0.0
    %82 = vmatpush1.msra.mxu0 0.0
    %83 = vmatprep.subr.mxu0 0.0
    %84 = vmatpush1.msra.mxu0 0.0
    %85 = vmatprep.subr.mxu0 0.0
    %86 = vmatpush1.msra.mxu0 0.0
    %87 = vmatprep.subr.mxu0 0.0
    %88 = vmatpush1.msra.mxu0 0.0
    %89 = vmatprep.subr.mxu0 0.0
    %90 = vmatpush1.msra.mxu0 0.0
    %91 = vmatprep.subr.mxu0 0.0
    %92 = vmatpush1.msra.mxu0 0.0
    %93 = vmatprep.subr.mxu0 0.0
    %94 = vmatpush1.msra.mxu0 0.0
    %95 = vmatprep.subr.mxu0 0.0
    %96 = vmatpush1.msra.mxu0 0.0
    %97 = vmatprep.subr.mxu0 0.0
    %98 = vmatpush1.msra.mxu0 0.0
    %99 = vmatprep.subr.mxu0 0.0
    %100 = vmatpush1.msra.mxu0 0.0
    %101 = vmatprep.subr.mxu0 0.0
    %102 = vmatpush1.msra.mxu0 0.0
    %103 = vmatprep.subr.mxu0 0.0
    %104 = vmatpush1.msra.mxu0 0.0
    %105 = vmatprep.subr.mxu0 0.0
    %106 = vmatpush1.msra.mxu0 0.0
    %107 = vmatprep.subr.mxu0 0.0
    %108 = vmatpush1.msra.mxu0 0.0
    %109 = vmatprep.subr.mxu0 0.0
    %110 = vmatpush1.msra.mxu0 0.0
    %111 = vmatprep.subr.mxu0 0.0
    %112 = vmatpush1.msra.mxu0 0.0
    %113 = vmatprep.subr.mxu0 0.0
    %114 = vmatpush1.msra.mxu0 0.0
    %115 = vmatprep.subr.mxu0 0.0
    %116 = vmatpush1.msra.mxu0 0.0
    %117 = vmatprep.subr.mxu0 0.0
    %118 = vmatpush1.msra.mxu0 0.0
    %119 = vmatprep.subr.mxu0 0.0
    %120 = vmatpush1.msra.mxu0 0.0
    %121 = vmatprep.subr.mxu0 0.0
    %122 = vmatpush1.msra.mxu0 0.0
    %123 = vmatprep.subr.mxu0 0.0
    %124 = vmatpush1.msra.mxu0 0.0
    %125 = vmatprep.subr.mxu0 0.0
    %126 = vmatpush1.msra.mxu0 0.0
    %127 = vmatprep.subr.mxu0 0.0
    %128 = vmatpush1.msra.mxu0 0.0
    %129 = vmatprep.subr.mxu0 0.0
    %130 = vmatpush1.msra.mxu0 0.0
    %131 = vmatprep.mubr.f32.mxu0 0.0
    %v132 = vand.u32 %v58, 4294901760
    %v133 = vsub.f32 %v58, %v132
    %v134 = vand.u32 %v133, 4294901760
    %v135 = vsub.f32 %v133, %v134
    %v136 = vand.u32 %v135, 4294901760
    %137 = vmatmul.mubr.f32.gmra.mrb[0].mxu0 %v136
    %v138 = vpop.f32.mrb[0].mxu0
    %v139 = vadd.f32 0.0, %v138
    %v140 = vpop.f32.mrb[0].mxu0
    %v141 = vadd.f32 0.0, %v140
    %142 = vmatprep.mubr.f32.mxu0 0.0
    %v143 = vand.u32 %v61, 4294901760
    %v144 = vsub.f32 %v61, %v143
    %v145 = vand.u32 %v144, 4294901760
    %v146 = vsub.f32 %v144, %v145
    %v147 = vand.u32 %v146, 4294901760
    %148 = vmatmul.mubr.f32.gmra.mrb[0].mxu0 %v147
    %v149 = vpop.f32.mrb[0].mxu0
    %v150 = vadd.f32 0.0, %v149
    %v151 = vpop.f32.mrb[0].mxu0
    %v152 = vadd.f32 0.0, %v151
    %153 = vdwg.mxu0
    %v154 = vand.u32 %v51, 4294901760
    %v155 = vsub.f32 %v51, %v154
    %v156 = vand.u32 %v155, 4294901760
    %v157 = vsub.f32 %v155, %v156
    %v158 = vand.u32 %v157, 4294901760
    %159 = vmatprep.subr.mxu0 %v158
    %v160 = vand.u32 %v50, 4294901760
    %v161 = vsub.f32 %v50, %v160
    %v162 = vand.u32 %v161, 4294901760
    %v163 = vsub.f32 %v161, %v162
    %v164 = vand.u32 %v163, 4294901760
    %165 = vmatpush1.msra.mxu0 %v164
    %v166 = vand.u32 %v54, 4294901760
    %v167 = vsub.f32 %v54, %v166
    %v168 = vand.u32 %v167, 4294901760
    %v169 = vsub.f32 %v167, %v168
    %v170 = vand.u32 %v169, 4294901760
    %171 = vmatprep.subr.mxu0 %v170
    %v172 = vand.u32 %v53, 4294901760
    %v173 = vsub.f32 %v53, %v172
    %v174 = vand.u32 %v173, 4294901760
    %v175 = vsub.f32 %v173, %v174
    %v176 = vand.u32 %v175, 4294901760
    %177 = vmatpush1.msra.mxu0 %v176
    %178 = vmatprep.subr.mxu0 0.0
    %179 = vmatpush1.msra.mxu0 0.0
    %180 = vmatprep.subr.mxu0 0.0
    %181 = vmatpush1.msra.mxu0 0.0
    %182 = vmatprep.subr.mxu0 0.0
    %183 = vmatpush1.msra.mxu0 0.0
    %184 = vmatprep.subr.mxu0 0.0
    %185 = vmatpush1.msra.mxu0 0.0
    %186 = vmatprep.subr.mxu0 0.0
    %187 = vmatpush1.msra.mxu0 0.0
    %188 = vmatprep.subr.mxu0 0.0
    %189 = vmatpush1.msra.mxu0 0.0
    %190 = vmatprep.subr.mxu0 0.0
    %191 = vmatpush1.msra.mxu0 0.0
    %192 = vmatprep.subr.mxu0 0.0
    %193 = vmatpush1.msra.mxu0 0.0
    %194 = vmatprep.subr.mxu0 0.0
    %195 = vmatpush1.msra.mxu0 0.0
    %196 = vmatprep.subr.mxu0 0.0
    %197 = vmatpush1.msra.mxu0 0.0
    %198 = vmatprep.subr.mxu0 0.0
    %199 = vmatpush1.msra.mxu0 0.0
    %200 = vmatprep.subr.mxu0 0.0
    %201 = vmatpush1.msra.mxu0 0.0
    %202 = vmatprep.subr.mxu0 0.0
    %203 = vmatpush1.msra.mxu0 0.0
    %204 = vmatprep.subr.mxu0 0.0
    %205 = vmatpush1.msra.mxu0 0.0
    %206 = vmatprep.subr.mxu0 0.0
    %207 = vmatpush1.msra.mxu0 0.0
    %208 = vmatprep.subr.mxu0 0.0
    %209 = vmatpush1.msra.mxu0 0.0
    %210 = vmatprep.subr.mxu0 0.0
    %211 = vmatpush1.msra.mxu0 0.0
    %212 = vmatprep.subr.mxu0 0.0
    %213 = vmatpush1.msra.mxu0 0.0
    %214 = vmatprep.subr.mxu0 0.0
    %215 = vmatpush1.msra.mxu0 0.0
    %216 = vmatprep.subr.mxu0 0.0
    %217 = vmatpush1.msra.mxu0 0.0
    %218 = vmatprep.subr.mxu0 0.0
    %219 = vmatpush1.msra.mxu0 0.0
    %220 = vmatprep.subr.mxu0 0.0
    %221 = vmatpush1.msra.mxu0 0.0
    %222 = vmatprep.subr.mxu0 0.0
    %223 = vmatpush1.msra.mxu0 0.0
    %224 = vmatprep.subr.mxu0 0.0
    %225 = vmatpush1.msra.mxu0 0.0
    %226 = vmatprep.subr.mxu0 0.0
    %227 = vmatpush1.msra.mxu0 0.0
    %228 = vmatprep.subr.mxu0 0.0
    %229 = vmatpush1.msra.mxu0 0.0
    %230 = vmatprep.subr.mxu0 0.0
    %231 = vmatpush1.msra.mxu0 0.0
    %232 = vmatprep.subr.mxu0 0.0
    %233 = vmatpush1.msra.mxu0 0.0
    %234 = vmatprep.subr.mxu0 0.0
    %235 = vmatpush1.msra.mxu0 0.0
    %236 = vmatprep.subr.mxu0 0.0
    %237 = vmatpush1.msra.mxu0 0.0
    %238 = vmatprep.mubr.f32.mxu0 0.0
    %v239 = vand.u32 %v58, 4294901760
    %240 = vmatmul.mubr.f32.gmra.mrb[0].mxu0 %v239
    %v241 = vpop.f32.mrb[0].mxu0
    %v242 = vadd.f32 %v139, %v241
    %v243 = vpop.f32.mrb[0].mxu0
    %v244 = vadd.f32 %v141, %v243
    %245 = vmatprep.mubr.f32.mxu0 0.0
    %v246 = vand.u32 %v61, 4294901760
    %247 = vmatmul.mubr.f32.gmra.mrb[0].mxu0 %v246
    %v248 = vpop.f32.mrb[0].mxu0
    %v249 = vadd.f32 %v150, %v248
    %v250 = vpop.f32.mrb[0].mxu0
    %v251 = vadd.f32 %v152, %v250
    %252 = vdwg.mxu0
    %v253 = vand.u32 %v51, 4294901760
    %v254 = vsub.f32 %v51, %v253
    %255 = vmatprep.subr.mxu0 %v254
    %v256 = vand.u32 %v50, 4294901760
    %v257 = vsub.f32 %v50, %v256
    %258 = vmatpush1.msra.mxu0 %v257
    %v259 = vand.u32 %v54, 4294901760
    %v260 = vsub.f32 %v54, %v259
    %261 = vmatprep.subr.mxu0 %v260
    %v262 = vand.u32 %v53, 4294901760
    %v263 = vsub.f32 %v53, %v262
    %264 = vmatpush1.msra.mxu0 %v263
    %265 = vmatprep.subr.mxu0 0.0
    %266 = vmatpush1.msra.mxu0 0.0
    %267 = vmatprep.subr.mxu0 0.0
    %268 = vmatpush1.msra.mxu0 0.0
    %269 = vmatprep.subr.mxu0 0.0
    %270 = vmatpush1.msra.mxu0 0.0
    %271 = vmatprep.subr.mxu0 0.0
    %272 = vmatpush1.msra.mxu0 0.0
    %273 = vmatprep.subr.mxu0 0.0
    %274 = vmatpush1.msra.mxu0 0.0
    %275 = vmatprep.subr.mxu0 0.0
    %276 = vmatpush1.msra.mxu0 0.0
    %277 = vmatprep.subr.mxu0 0.0
    %278 = vmatpush1.msra.mxu0 0.0
    %279 = vmatprep.subr.mxu0 0.0
    %280 = vmatpush1.msra.mxu0 0.0
    %281 = vmatprep.subr.mxu0 0.0
    %282 = vmatpush1.msra.mxu0 0.0
    %283 = vmatprep.subr.mxu0 0.0
    %284 = vmatpush1.msra.mxu0 0.0
    %285 = vmatprep.subr.mxu0 0.0
    %286 = vmatpush1.msra.mxu0 0.0
    %287 = vmatprep.subr.mxu0 0.0
    %288 = vmatpush1.msra.mxu0 0.0
    %289 = vmatprep.subr.mxu0 0.0
    %290 = vmatpush1.msra.mxu0 0.0
    %291 = vmatprep.subr.mxu0 0.0
    %292 = vmatpush1.msra.mxu0 0.0
    %293 = vmatprep.subr.mxu0 0.0
    %294 = vmatpush1.msra.mxu0 0.0
    %295 = vmatprep.subr.mxu0 0.0
    %296 = vmatpush1.msra.mxu0 0.0
    %297 = vmatprep.subr.mxu0 0.0
    %298 = vmatpush1.msra.mxu0 0.0
    %299 = vmatprep.subr.mxu0 0.0
    %300 = vmatpush1.msra.mxu0 0.0
    %301 = vmatprep.subr.mxu0 0.0
    %302 = vmatpush1.msra.mxu0 0.0
    %303 = vmatprep.subr.mxu0 0.0
    %304 = vmatpush1.msra.mxu0 0.0
    %305 = vmatprep.subr.mxu0 0.0
    %306 = vmatpush1.msra.mxu0 0.0
    %307 = vmatprep.subr.mxu0 0.0
    %308 = vmatpush1.msra.mxu0 0.0
    %309 = vmatprep.subr.mxu0 0.0
    %310 = vmatpush1.msra.mxu0 0.0
    %311 = vmatprep.subr.mxu0 0.0
    %312 = vmatpush1.msra.mxu0 0.0
    %313 = vmatprep.subr.mxu0 0.0
    %314 = vmatpush1.msra.mxu0 0.0
    %315 = vmatprep.subr.mxu0 0.0
    %316 = vmatpush1.msra.mxu0 0.0
    %317 = vmatprep.subr.mxu0 0.0
    %318 = vmatpush1.msra.mxu0 0.0
    %319 = vmatprep.subr.mxu0 0.0
    %320 = vmatpush1.msra.mxu0 0.0
    %321 = vmatprep.subr.mxu0 0.0
    %322 = vmatpush1.msra.mxu0 0.0
    %323 = vmatprep.subr.mxu0 0.0
    %324 = vmatpush1.msra.mxu0 0.0
    %325 = vmatprep.mubr.f32.mxu0 0.0
    %v326 = vand.u32 %v58, 4294901760
    %v327 = vsub.f32 %v58, %v326
    %328 = vmatmul.mubr.f32.gmra.mrb[0].mxu0 %v327
    %v329 = vpop.f32.mrb[0].mxu0
    %v330 = vadd.f32 %v242, %v329
    %v331 = vpop.f32.mrb[0].mxu0
    %v332 = vadd.f32 %v244, %v331
    %333 = vmatprep.mubr.f32.mxu0 0.0
    %v334 = vand.u32 %v61, 4294901760
    %v335 = vsub.f32 %v61, %v334
    %336 = vmatmul.mubr.f32.gmra.mrb[0].mxu0 %v335
    %v337 = vpop.f32.mrb[0].mxu0
    %v338 = vadd.f32 %v249, %v337
    %v339 = vpop.f32.mrb[0].mxu0
    %v340 = vadd.f32 %v251, %v339
    %341 = vdwg.mxu0
    %v342 = vand.u32 %v51, 4294901760
    %343 = vmatprep.subr.mxu0 %v342
    %v344 = vand.u32 %v50, 4294901760
    %345 = vmatpush1.msra.mxu0 %v344
    %v346 = vand.u32 %v54, 4294901760
    %347 = vmatprep.subr.mxu0 %v346
    %v348 = vand.u32 %v53, 4294901760
    %349 = vmatpush1.msra.mxu0 %v348
    %350 = vmatprep.subr.mxu0 0.0
    %351 = vmatpush1.msra.mxu0 0.0
    %352 = vmatprep.subr.mxu0 0.0
    %353 = vmatpush1.msra.mxu0 0.0
    %354 = vmatprep.subr.mxu0 0.0
    %355 = vmatpush1.msra.mxu0 0.0
    %356 = vmatprep.subr.mxu0 0.0
    %357 = vmatpush1.msra.mxu0 0.0
    %358 = vmatprep.subr.mxu0 0.0
    %359 = vmatpush1.msra.mxu0 0.0
    %360 = vmatprep.subr.mxu0 0.0
    %361 = vmatpush1.msra.mxu0 0.0
    %362 = vmatprep.subr.mxu0 0.0
    %363 = vmatpush1.msra.mxu0 0.0
    %364 = vmatprep.subr.mxu0 0.0
    %365 = vmatpush1.msra.mxu0 0.0
    %366 = vmatprep.subr.mxu0 0.0
    %367 = vmatpush1.msra.mxu0 0.0
    %368 = vmatprep.subr.mxu0 0.0
    %369 = vmatpush1.msra.mxu0 0.0
    %370 = vmatprep.subr.mxu0 0.0
    %371 = vmatpush1.msra.mxu0 0.0
    %372 = vmatprep.subr.mxu0 0.0
    %373 = vmatpush1.msra.mxu0 0.0
    %374 = vmatprep.subr.mxu0 0.0
    %375 = vmatpush1.msra.mxu0 0.0
    %376 = vmatprep.subr.mxu0 0.0
    %377 = vmatpush1.msra.mxu0 0.0
    %378 = vmatprep.subr.mxu0 0.0
    %379 = vmatpush1.msra.mxu0 0.0
    %380 = vmatprep.subr.mxu0 0.0
    %381 = vmatpush1.msra.mxu0 0.0
    %382 = vmatprep.subr.mxu0 0.0
    %383 = vmatpush1.msra.mxu0 0.0
    %384 = vmatprep.subr.mxu0 0.0
    %385 = vmatpush1.msra.mxu0 0.0
    %386 = vmatprep.subr.mxu0 0.0
    %387 = vmatpush1.msra.mxu0 0.0
    %388 = vmatprep.subr.mxu0 0.0
    %389 = vmatpush1.msra.mxu0 0.0
    %390 = vmatprep.subr.mxu0 0.0
    %391 = vmatpush1.msra.mxu0 0.0
    %392 = vmatprep.subr.mxu0 0.0
    %393 = vmatpush1.msra.mxu0 0.0
    %394 = vmatprep.subr.mxu0 0.0
    %395 = vmatpush1.msra.mxu0 0.0
    %396 = vmatprep.subr.mxu0 0.0
    %397 = vmatpush1.msra.mxu0 0.0
    %398 = vmatprep.subr.mxu0 0.0
    %399 = vmatpush1.msra.mxu0 0.0
    %400 = vmatprep.subr.mxu0 0.0
    %401 = vmatpush1.msra.mxu0 0.0
    %402 = vmatprep.subr.mxu0 0.0
    %403 = vmatpush1.msra.mxu0 0.0
    %404 = vmatprep.subr.mxu0 0.0
    %405 = vmatpush1.msra.mxu0 0.0
    %406 = vmatprep.subr.mxu0 0.0
    %407 = vmatpush1.msra.mxu0 0.0
    %408 = vmatprep.subr.mxu0 0.0
    %409 = vmatpush1.msra.mxu0 0.0
    %410 = vmatprep.mubr.f32.mxu0 0.0
    %v411 = vand.u32 %v58, 4294901760
    %v412 = vsub.f32 %v58, %v411
    %v413 = vand.u32 %v412, 4294901760
    %414 = vmatmul.mubr.f32.gmra.mrb[0].mxu0 %v413
    %v415 = vpop.f32.mrb[0].mxu0
    %v416 = vadd.f32 %v330, %v415
    %v417 = vpop.f32.mrb[0].mxu0
    %v418 = vadd.f32 %v332, %v417
    %419 = vmatprep.mubr.f32.mxu0 0.0
    %v420 = vand.u32 %v61, 4294901760
    %v421 = vsub.f32 %v61, %v420
    %v422 = vand.u32 %v421, 4294901760
    %423 = vmatmul.mubr.f32.gmra.mrb[0].mxu0 %v422
    %v424 = vpop.f32.mrb[0].mxu0
    %v425 = vadd.f32 %v338, %v424
    %v426 = vpop.f32.mrb[0].mxu0
    %v427 = vadd.f32 %v340, %v426
    %428 = vdwg.mxu0
    %v429 = vand.u32 %v51, 4294901760
    %v430 = vsub.f32 %v51, %v429
    %v431 = vand.u32 %v430, 4294901760
    %432 = vmatprep.subr.mxu0 %v431
    %v433 = vand.u32 %v50, 4294901760
    %v434 = vsub.f32 %v50, %v433
    %v435 = vand.u32 %v434, 4294901760
    %436 = vmatpush1.msra.mxu0 %v435
    %v437 = vand.u32 %v54, 4294901760
    %v438 = vsub.f32 %v54, %v437
    %v439 = vand.u32 %v438, 4294901760
    %440 = vmatprep.subr.mxu0 %v439
    %v441 = vand.u32 %v53, 4294901760
    %v442 = vsub.f32 %v53, %v441
    %v443 = vand.u32 %v442, 4294901760
    %444 = vmatpush1.msra.mxu0 %v443
    %445 = vmatprep.subr.mxu0 0.0
    %446 = vmatpush1.msra.mxu0 0.0
    %447 = vmatprep.subr.mxu0 0.0
    %448 = vmatpush1.msra.mxu0 0.0
    %449 = vmatprep.subr.mxu0 0.0
    %450 = vmatpush1.msra.mxu0 0.0
    %451 = vmatprep.subr.mxu0 0.0
    %452 = vmatpush1.msra.mxu0 0.0
    %453 = vmatprep.subr.mxu0 0.0
    %454 = vmatpush1.msra.mxu0 0.0
    %455 = vmatprep.subr.mxu0 0.0
    %456 = vmatpush1.msra.mxu0 0.0
    %457 = vmatprep.subr.mxu0 0.0
    %458 = vmatpush1.msra.mxu0 0.0
    %459 = vmatprep.subr.mxu0 0.0
    %460 = vmatpush1.msra.mxu0 0.0
    %461 = vmatprep.subr.mxu0 0.0
    %462 = vmatpush1.msra.mxu0 0.0
    %463 = vmatprep.subr.mxu0 0.0
    %464 = vmatpush1.msra.mxu0 0.0
    %465 = vmatprep.subr.mxu0 0.0
    %466 = vmatpush1.msra.mxu0 0.0
    %467 = vmatprep.subr.mxu0 0.0
    %468 = vmatpush1.msra.mxu0 0.0
    %469 = vmatprep.subr.mxu0 0.0
    %470 = vmatpush1.msra.mxu0 0.0
    %471 = vmatprep.subr.mxu0 0.0
    %472 = vmatpush1.msra.mxu0 0.0
    %473 = vmatprep.subr.mxu0 0.0
    %474 = vmatpush1.msra.mxu0 0.0
    %475 = vmatprep.subr.mxu0 0.0
    %476 = vmatpush1.msra.mxu0 0.0
    %477 = vmatprep.subr.mxu0 0.0
    %478 = vmatpush1.msra.mxu0 0.0
    %479 = vmatprep.subr.mxu0 0.0
    %480 = vmatpush1.msra.mxu0 0.0
    %481 = vmatprep.subr.mxu0 0.0
    %482 = vmatpush1.msra.mxu0 0.0
    %483 = vmatprep.subr.mxu0 0.0
    %484 = vmatpush1.msra.mxu0 0.0
    %485 = vmatprep.subr.mxu0 0.0
    %486 = vmatpush1.msra.mxu0 0.0
    %487 = vmatprep.subr.mxu0 0.0
    %488 = vmatpush1.msra.mxu0 0.0
    %489 = vmatprep.subr.mxu0 0.0
    %490 = vmatpush1.msra.mxu0 0.0
    %491 = vmatprep.subr.mxu0 0.0
    %492 = vmatpush1.msra.mxu0 0.0
    %493 = vmatprep.subr.mxu0 0.0
    %494 = vmatpush1.msra.mxu0 0.0
    %495 = vmatprep.subr.mxu0 0.0
    %496 = vmatpush1.msra.mxu0 0.0
    %497 = vmatprep.subr.mxu0 0.0
    %498 = vmatpush1.msra.mxu0 0.0
    %499 = vmatprep.subr.mxu0 0.0
    %500 = vmatpush1.msra.mxu0 0.0
    %501 = vmatprep.subr.mxu0 0.0
    %502 = vmatpush1.msra.mxu0 0.0
    %503 = vmatprep.subr.mxu0 0.0
    %504 = vmatpush1.msra.mxu0 0.0
    %505 = vmatprep.mubr.f32.mxu0 0.0
    %v506 = vand.u32 %v58, 4294901760
    %507 = vmatmul.mubr.f32.gmra.mrb[0].mxu0 %v506
    %v508 = vpop.f32.mrb[0].mxu0
    %v509 = vadd.f32 %v416, %v508
    %v510 = vpop.f32.mrb[0].mxu0
    %v511 = vadd.f32 %v418, %v510
    %512 = vmatprep.mubr.f32.mxu0 0.0
    %v513 = vand.u32 %v61, 4294901760
    %514 = vmatmul.mubr.f32.gmra.mrb[0].mxu0 %v513
    %v515 = vpop.f32.mrb[0].mxu0
    %v516 = vadd.f32 %v425, %v515
    %v517 = vpop.f32.mrb[0].mxu0
    %v518 = vadd.f32 %v427, %v517
    %519 = vdwg.mxu0
    %v520 = vand.u32 %v51, 4294901760
    %521 = vmatprep.subr.mxu0 %v520
    %v522 = vand.u32 %v50, 4294901760
    %523 = vmatpush1.msra.mxu0 %v522
    %v524 = vand.u32 %v54, 4294901760
    %525 = vmatprep.subr.mxu0 %v524
    %v526 = vand.u32 %v53, 4294901760
    %527 = vmatpush1.msra.mxu0 %v526
    %528 = vmatprep.subr.mxu0 0.0
    %529 = vmatpush1.msra.mxu0 0.0
    %530 = vmatprep.subr.mxu0 0.0
    %531 = vmatpush1.msra.mxu0 0.0
    %532 = vmatprep.subr.mxu0 0.0
    %533 = vmatpush1.msra.mxu0 0.0
    %534 = vmatprep.subr.mxu0 0.0
    %535 = vmatpush1.msra.mxu0 0.0
    %536 = vmatprep.subr.mxu0 0.0
    %537 = vmatpush1.msra.mxu0 0.0
    %538 = vmatprep.subr.mxu0 0.0
    %539 = vmatpush1.msra.mxu0 0.0
    %540 = vmatprep.subr.mxu0 0.0
    %541 = vmatpush1.msra.mxu0 0.0
    %542 = vmatprep.subr.mxu0 0.0
    %543 = vmatpush1.msra.mxu0 0.0
    %544 = vmatprep.subr.mxu0 0.0
    %545 = vmatpush1.msra.mxu0 0.0
    %546 = vmatprep.subr.mxu0 0.0
    %547 = vmatpush1.msra.mxu0 0.0
    %548 = vmatprep.subr.mxu0 0.0
    %549 = vmatpush1.msra.mxu0 0.0
    %550 = vmatprep.subr.mxu0 0.0
    %551 = vmatpush1.msra.mxu0 0.0
    %552 = vmatprep.subr.mxu0 0.0
    %553 = vmatpush1.msra.mxu0 0.0
    %554 = vmatprep.subr.mxu0 0.0
    %555 = vmatpush1.msra.mxu0 0.0
    %556 = vmatprep.subr.mxu0 0.0
    %557 = vmatpush1.msra.mxu0 0.0
    %558 = vmatprep.subr.mxu0 0.0
    %559 = vmatpush1.msra.mxu0 0.0
    %560 = vmatprep.subr.mxu0 0.0
    %561 = vmatpush1.msra.mxu0 0.0
    %562 = vmatprep.subr.mxu0 0.0
    %563 = vmatpush1.msra.mxu0 0.0
    %564 = vmatprep.subr.mxu0 0.0
    %565 = vmatpush1.msra.mxu0 0.0
    %566 = vmatprep.subr.mxu0 0.0
    %567 = vmatpush1.msra.mxu0 0.0
    %568 = vmatprep.subr.mxu0 0.0
    %569 = vmatpush1.msra.mxu0 0.0
    %570 = vmatprep.subr.mxu0 0.0
    %571 = vmatpush1.msra.mxu0 0.0
    %572 = vmatprep.subr.mxu0 0.0
    %573 = vmatpush1.msra.mxu0 0.0
    %574 = vmatprep.subr.mxu0 0.0
    %575 = vmatpush1.msra.mxu0 0.0
    %576 = vmatprep.subr.mxu0 0.0
    %577 = vmatpush1.msra.mxu0 0.0
    %578 = vmatprep.subr.mxu0 0.0
    %579 = vmatpush1.msra.mxu0 0.0
    %580 = vmatprep.subr.mxu0 0.0
    %581 = vmatpush1.msra.mxu0 0.0
    %582 = vmatprep.subr.mxu0 0.0
    %583 = vmatpush1.msra.mxu0 0.0
    %584 = vmatprep.subr.mxu0 0.0
    %585 = vmatpush1.msra.mxu0 0.0
    %586 = vmatprep.subr.mxu0 0.0
    %587 = vmatpush1.msra.mxu0 0.0
    %588 = vmatprep.mubr.f32.mxu0 0.0
    %v589 = vand.u32 %v58, 4294901760
    %590 = vmatmul.mubr.f32.gmra.mrb[0].mxu0 %v589
    %v591 = vpop.f32.mrb[0].mxu0
    %v592 = vadd.f32 %v509, %v591
    %v593 = vpop.f32.mrb[0].mxu0
    %v594 = vadd.f32 %v511, %v593
    %595 = vmatprep.mubr.f32.mxu0 0.0
    %v596 = vand.u32 %v61, 4294901760
    %597 = vmatmul.mubr.f32.gmra.mrb[0].mxu0 %v596
    %v598 = vpop.f32.mrb[0].mxu0
    %v599 = vadd.f32 %v516, %v598
    %v600 = vpop.f32.mrb[0].mxu0
    %v601 = vadd.f32 %v518, %v600
    %602 = vdwg.mxu0
    %603 = vmatprep.subr.mxu0 0.0
    %v604 = vand.u32 %v52, 4294901760
    %605 = vmatpush1.msra.mxu0 %v604
    %606 = vmatprep.subr.mxu0 0.0
    %v607 = vand.u32 %v55, 4294901760
    %608 = vmatpush1.msra.mxu0 %v607
    %609 = vmatprep.subr.mxu0 0.0
    %610 = vmatpush1.msra.mxu0 0.0
    %611 = vmatprep.subr.mxu0 0.0
    %612 = vmatpush1.msra.mxu0 0.0
    %613 = vmatprep.subr.mxu0 0.0
    %614 = vmatpush1.msra.mxu0 0.0
    %615 = vmatprep.subr.mxu0 0.0
    %616 = vmatpush1.msra.mxu0 0.0
    %617 = vmatprep.subr.mxu0 0.0
    %618 = vmatpush1.msra.mxu0 0.0
    %619 = vmatprep.subr.mxu0 0.0
    %620 = vmatpush1.msra.mxu0 0.0
    %621 = vmatprep.subr.mxu0 0.0
    %622 = vmatpush1.msra.mxu0 0.0
    %623 = vmatprep.subr.mxu0 0.0
    %624 = vmatpush1.msra.mxu0 0.0
    %625 = vmatprep.subr.mxu0 0.0
    %626 = vmatpush1.msra.mxu0 0.0
    %627 = vmatprep.subr.mxu0 0.0
    %628 = vmatpush1.msra.mxu0 0.0
    %629 = vmatprep.subr.mxu0 0.0
    %630 = vmatpush1.msra.mxu0 0.0
    %631 = vmatprep.subr.mxu0 0.0
    %632 = vmatpush1.msra.mxu0 0.0
    %633 = vmatprep.subr.mxu0 0.0
    %634 = vmatpush1.msra.mxu0 0.0
    %635 = vmatprep.subr.mxu0 0.0
    %636 = vmatpush1.msra.mxu0 0.0
    %637 = vmatprep.subr.mxu0 0.0
    %638 = vmatpush1.msra.mxu0 0.0
    %639 = vmatprep.subr.mxu0 0.0
    %640 = vmatpush1.msra.mxu0 0.0
    %641 = vmatprep.subr.mxu0 0.0
    %642 = vmatpush1.msra.mxu0 0.0
    %643 = vmatprep.subr.mxu0 0.0
    %644 = vmatpush1.msra.mxu0 0.0
    %645 = vmatprep.subr.mxu0 0.0
    %646 = vmatpush1.msra.mxu0 0.0
    %647 = vmatprep.subr.mxu0 0.0
    %648 = vmatpush1.msra.mxu0 0.0
    %649 = vmatprep.subr.mxu0 0.0
    %650 = vmatpush1.msra.mxu0 0.0
    %651 = vmatprep.subr.mxu0 0.0
    %652 = vmatpush1.msra.mxu0 0.0
    %653 = vmatprep.subr.mxu0 0.0
    %654 = vmatpush1.msra.mxu0 0.0
    %655 = vmatprep.subr.mxu0 0.0
    %656 = vmatpush1.msra.mxu0 0.0
    %657 = vmatprep.subr.mxu0 0.0
    %658 = vmatpush1.msra.mxu0 0.0
    %659 = vmatprep.subr.mxu0 0.0
    %660 = vmatpush1.msra.mxu0 0.0
    %661 = vmatprep.subr.mxu0 0.0
    %662 = vmatpush1.msra.mxu0 0.0
    %663 = vmatprep.subr.mxu0 0.0
    %664 = vmatpush1.msra.mxu0 0.0
    %665 = vmatprep.subr.mxu0 0.0
    %666 = vmatpush1.msra.mxu0 0.0
    %667 = vmatprep.subr.mxu0 0.0
    %668 = vmatpush1.msra.mxu0 0.0
    %669 = vmatprep.mubr.f32.mxu0 0.0
    %v670 = vand.u32 %v58, 4294901760
    %v671 = vsub.f32 %v58, %v670
    %v672 = vand.u32 %v671, 4294901760
    %v673 = vsub.f32 %v671, %v672
    %v674 = vand.u32 %v673, 4294901760
    %675 = vmatmul.mubr.f32.gmra.mrb[0].mxu0 %v674
    %v676 = vpop.f32.mrb[0].mxu0
    %v677 = vadd.f32 0.0, %v676
    %v678 = vpop.f32.mrb[0].mxu0
    %679 = vmatprep.mubr.f32.mxu0 0.0
    %v680 = vand.u32 %v61, 4294901760
    %v681 = vsub.f32 %v61, %v680
    %v682 = vand.u32 %v681, 4294901760
    %v683 = vsub.f32 %v681, %v682
    %v684 = vand.u32 %v683, 4294901760
    %685 = vmatmul.mubr.f32.gmra.mrb[0].mxu0 %v684
    %v686 = vpop.f32.mrb[0].mxu0
    %v687 = vadd.f32 0.0, %v686
    %v688 = vpop.f32.mrb[0].mxu0
    %689 = vdwg.mxu0
    %690 = vmatprep.subr.mxu0 0.0
    %v691 = vand.u32 %v52, 4294901760
    %v692 = vsub.f32 %v52, %v691
    %v693 = vand.u32 %v692, 4294901760
    %v694 = vsub.f32 %v692, %v693
    %v695 = vand.u32 %v694, 4294901760
    %696 = vmatpush1.msra.mxu0 %v695
    %697 = vmatprep.subr.mxu0 0.0
    %v698 = vand.u32 %v55, 4294901760
    %v699 = vsub.f32 %v55, %v698
    %v700 = vand.u32 %v699, 4294901760
    %v701 = vsub.f32 %v699, %v700
    %v702 = vand.u32 %v701, 4294901760
    %703 = vmatpush1.msra.mxu0 %v702
    %704 = vmatprep.subr.mxu0 0.0
    %705 = vmatpush1.msra.mxu0 0.0
    %706 = vmatprep.subr.mxu0 0.0
    %707 = vmatpush1.msra.mxu0 0.0
    %708 = vmatprep.subr.mxu0 0.0
    %709 = vmatpush1.msra.mxu0 0.0
    %710 = vmatprep.subr.mxu0 0.0
    %711 = vmatpush1.msra.mxu0 0.0
    %712 = vmatprep.subr.mxu0 0.0
    %713 = vmatpush1.msra.mxu0 0.0
    %714 = vmatprep.subr.mxu0 0.0
    %715 = vmatpush1.msra.mxu0 0.0
    %716 = vmatprep.subr.mxu0 0.0
    %717 = vmatpush1.msra.mxu0 0.0
    %718 = vmatprep.subr.mxu0 0.0
    %719 = vmatpush1.msra.mxu0 0.0
    %720 = vmatprep.subr.mxu0 0.0
    %721 = vmatpush1.msra.mxu0 0.0
    %722 = vmatprep.subr.mxu0 0.0
    %723 = vmatpush1.msra.mxu0 0.0
    %724 = vmatprep.subr.mxu0 0.0
    %725 = vmatpush1.msra.mxu0 0.0
    %726 = vmatprep.subr.mxu0 0.0
    %727 = vmatpush1.msra.mxu0 0.0
    %728 = vmatprep.subr.mxu0 0.0
    %729 = vmatpush1.msra.mxu0 0.0
    %730 = vmatprep.subr.mxu0 0.0
    %731 = vmatpush1.msra.mxu0 0.0
    %732 = vmatprep.subr.mxu0 0.0
    %733 = vmatpush1.msra.mxu0 0.0
    %734 = vmatprep.subr.mxu0 0.0
    %735 = vmatpush1.msra.mxu0 0.0
    %736 = vmatprep.subr.mxu0 0.0
    %737 = vmatpush1.msra.mxu0 0.0
    %738 = vmatprep.subr.mxu0 0.0
    %739 = vmatpush1.msra.mxu0 0.0
    %740 = vmatprep.subr.mxu0 0.0
    %741 = vmatpush1.msra.mxu0 0.0
    %742 = vmatprep.subr.mxu0 0.0
    %743 = vmatpush1.msra.mxu0 0.0
    %744 = vmatprep.subr.mxu0 0.0
    %745 = vmatpush1.msra.mxu0 0.0
    %746 = vmatprep.subr.mxu0 0.0
    %747 = vmatpush1.msra.mxu0 0.0
    %748 = vmatprep.subr.mxu0 0.0
    %749 = vmatpush1.msra.mxu0 0.0
    %750 = vmatprep.subr.mxu0 0.0
    %751 = vmatpush1.msra.mxu0 0.0
    %752 = vmatprep.subr.mxu0 0.0
    %753 = vmatpush1.msra.mxu0 0.0
    %754 = vmatprep.subr.mxu0 0.0
    %755 = vmatpush1.msra.mxu0 0.0
    %756 = vmatprep.subr.mxu0 0.0
    %757 = vmatpush1.msra.mxu0 0.0
    %758 = vmatprep.subr.mxu0 0.0
    %759 = vmatpush1.msra.mxu0 0.0
    %760 = vmatprep.subr.mxu0 0.0
    %761 = vmatpush1.msra.mxu0 0.0
    %762 = vmatprep.subr.mxu0 0.0
    %763 = vmatpush1.msra.mxu0 0.0
    %764 = vmatprep.mubr.f32.mxu0 0.0
    %v765 = vand.u32 %v58, 4294901760
    %766 = vmatmul.mubr.f32.gmra.mrb[0].mxu0 %v765
    %v767 = vpop.f32.mrb[0].mxu0
    %v768 = vadd.f32 %v677, %v767
    %v769 = vpop.f32.mrb[0].mxu0
    %770 = vmatprep.mubr.f32.mxu0 0.0
    %v771 = vand.u32 %v61, 4294901760
    %772 = vmatmul.mubr.f32.gmra.mrb[0].mxu0 %v771
    %v773 = vpop.f32.mrb[0].mxu0
    %v774 = vadd.f32 %v687, %v773
    %v775 = vpop.f32.mrb[0].mxu0
    %776 = vdwg.mxu0
    %777 = vmatprep.subr.mxu0 0.0
    %v778 = vand.u32 %v52, 4294901760
    %v779 = vsub.f32 %v52, %v778
    %780 = vmatpush1.msra.mxu0 %v779
    %781 = vmatprep.subr.mxu0 0.0
    %v782 = vand.u32 %v55, 4294901760
    %v783 = vsub.f32 %v55, %v782
    %784 = vmatpush1.msra.mxu0 %v783
    %785 = vmatprep.subr.mxu0 0.0
    %786 = vmatpush1.msra.mxu0 0.0
    %787 = vmatprep.subr.mxu0 0.0
    %788 = vmatpush1.msra.mxu0 0.0
    %789 = vmatprep.subr.mxu0 0.0
    %790 = vmatpush1.msra.mxu0 0.0
    %791 = vmatprep.subr.mxu0 0.0
    %792 = vmatpush1.msra.mxu0 0.0
    %793 = vmatprep.subr.mxu0 0.0
    %794 = vmatpush1.msra.mxu0 0.0
    %795 = vmatprep.subr.mxu0 0.0
    %796 = vmatpush1.msra.mxu0 0.0
    %797 = vmatprep.subr.mxu0 0.0
    %798 = vmatpush1.msra.mxu0 0.0
    %799 = vmatprep.subr.mxu0 0.0
    %800 = vmatpush1.msra.mxu0 0.0
    %801 = vmatprep.subr.mxu0 0.0
    %802 = vmatpush1.msra.mxu0 0.0
    %803 = vmatprep.subr.mxu0 0.0
    %804 = vmatpush1.msra.mxu0 0.0
    %805 = vmatprep.subr.mxu0 0.0
    %806 = vmatpush1.msra.mxu0 0.0
    %807 = vmatprep.subr.mxu0 0.0
    %808 = vmatpush1.msra.mxu0 0.0
    %809 = vmatprep.subr.mxu0 0.0
    %810 = vmatpush1.msra.mxu0 0.0
    %811 = vmatprep.subr.mxu0 0.0
    %812 = vmatpush1.msra.mxu0 0.0
    %813 = vmatprep.subr.mxu0 0.0
    %814 = vmatpush1.msra.mxu0 0.0
    %815 = vmatprep.subr.mxu0 0.0
    %816 = vmatpush1.msra.mxu0 0.0
    %817 = vmatprep.subr.mxu0 0.0
    %818 = vmatpush1.msra.mxu0 0.0
    %819 = vmatprep.subr.mxu0 0.0
    %820 = vmatpush1.msra.mxu0 0.0
    %821 = vmatprep.subr.mxu0 0.0
    %822 = vmatpush1.msra.mxu0 0.0
    %823 = vmatprep.subr.mxu0 0.0
    %824 = vmatpush1.msra.mxu0 0.0
    %825 = vmatprep.subr.mxu0 0.0
    %826 = vmatpush1.msra.mxu0 0.0
    %827 = vmatprep.subr.mxu0 0.0
    %828 = vmatpush1.msra.mxu0 0.0
    %829 = vmatprep.subr.mxu0 0.0
    %830 = vmatpush1.msra.mxu0 0.0
    %831 = vmatprep.subr.mxu0 0.0
    %832 = vmatpush1.msra.mxu0 0.0
    %833 = vmatprep.subr.mxu0 0.0
    %834 = vmatpush1.msra.mxu0 0.0
    %835 = vmatprep.subr.mxu0 0.0
    %836 = vmatpush1.msra.mxu0 0.0
    %837 = vmatprep.subr.mxu0 0.0
    %838 = vmatpush1.msra.mxu0 0.0
    %839 = vmatprep.subr.mxu0 0.0
    %840 = vmatpush1.msra.mxu0 0.0
    %841 = vmatprep.subr.mxu0 0.0
    %842 = vmatpush1.msra.mxu0 0.0
    %843 = vmatprep.subr.mxu0 0.0
    %844 = vmatpush1.msra.mxu0 0.0
    %845 = vmatprep.mubr.f32.mxu0 0.0
    %v846 = vand.u32 %v58, 4294901760
    %v847 = vsub.f32 %v58, %v846
    %848 = vmatmul.mubr.f32.gmra.mrb[0].mxu0 %v847
    %v849 = vpop.f32.mrb[0].mxu0
    %v850 = vadd.f32 %v768, %v849
    %v851 = vpop.f32.mrb[0].mxu0
    %852 = vmatprep.mubr.f32.mxu0 0.0
    %v853 = vand.u32 %v61, 4294901760
    %v854 = vsub.f32 %v61, %v853
    %855 = vmatmul.mubr.f32.gmra.mrb[0].mxu0 %v854
    %v856 = vpop.f32.mrb[0].mxu0
    %v857 = vadd.f32 %v774, %v856
    %v858 = vpop.f32.mrb[0].mxu0
    %859 = vdwg.mxu0
    %860 = vmatprep.subr.mxu0 0.0
    %v861 = vand.u32 %v52, 4294901760
    %862 = vmatpush1.msra.mxu0 %v861
    %863 = vmatprep.subr.mxu0 0.0
    %v864 = vand.u32 %v55, 4294901760
    %865 = vmatpush1.msra.mxu0 %v864
    %866 = vmatprep.subr.mxu0 0.0
    %867 = vmatpush1.msra.mxu0 0.0
    %868 = vmatprep.subr.mxu0 0.0
    %869 = vmatpush1.msra.mxu0 0.0
    %870 = vmatprep.subr.mxu0 0.0
    %871 = vmatpush1.msra.mxu0 0.0
    %872 = vmatprep.subr.mxu0 0.0
    %873 = vmatpush1.msra.mxu0 0.0
    %874 = vmatprep.subr.mxu0 0.0
    %875 = vmatpush1.msra.mxu0 0.0
    %876 = vmatprep.subr.mxu0 0.0
    %877 = vmatpush1.msra.mxu0 0.0
    %878 = vmatprep.subr.mxu0 0.0
    %879 = vmatpush1.msra.mxu0 0.0
    %880 = vmatprep.subr.mxu0 0.0
    %881 = vmatpush1.msra.mxu0 0.0
    %882 = vmatprep.subr.mxu0 0.0
    %883 = vmatpush1.msra.mxu0 0.0
    %884 = vmatprep.subr.mxu0 0.0
    %885 = vmatpush1.msra.mxu0 0.0
    %886 = vmatprep.subr.mxu0 0.0
    %887 = vmatpush1.msra.mxu0 0.0
    %888 = vmatprep.subr.mxu0 0.0
    %889 = vmatpush1.msra.mxu0 0.0
    %890 = vmatprep.subr.mxu0 0.0
    %891 = vmatpush1.msra.mxu0 0.0
    %892 = vmatprep.subr.mxu0 0.0
    %893 = vmatpush1.msra.mxu0 0.0
    %894 = vmatprep.subr.mxu0 0.0
    %895 = vmatpush1.msra.mxu0 0.0
    %896 = vmatprep.subr.mxu0 0.0
    %897 = vmatpush1.msra.mxu0 0.0
    %898 = vmatprep.subr.mxu0 0.0
    %899 = vmatpush1.msra.mxu0 0.0
    %900 = vmatprep.subr.mxu0 0.0
    %901 = vmatpush1.msra.mxu0 0.0
    %902 = vmatprep.subr.mxu0 0.0
    %903 = vmatpush1.msra.mxu0 0.0
    %904 = vmatprep.subr.mxu0 0.0
    %905 = vmatpush1.msra.mxu0 0.0
    %906 = vmatprep.subr.mxu0 0.0
    %907 = vmatpush1.msra.mxu0 0.0
    %908 = vmatprep.subr.mxu0 0.0
    %909 = vmatpush1.msra.mxu0 0.0
    %910 = vmatprep.subr.mxu0 0.0
    %911 = vmatpush1.msra.mxu0 0.0
    %912 = vmatprep.subr.mxu0 0.0
    %913 = vmatpush1.msra.mxu0 0.0
    %914 = vmatprep.subr.mxu0 0.0
    %915 = vmatpush1.msra.mxu0 0.0
    %916 = vmatprep.subr.mxu0 0.0
    %917 = vmatpush1.msra.mxu0 0.0
    %918 = vmatprep.subr.mxu0 0.0
    %919 = vmatpush1.msra.mxu0 0.0
    %920 = vmatprep.subr.mxu0 0.0
    %921 = vmatpush1.msra.mxu0 0.0
    %922 = vmatprep.subr.mxu0 0.0
    %923 = vmatpush1.msra.mxu0 0.0
    %924 = vmatprep.subr.mxu0 0.0
    %925 = vmatpush1.msra.mxu0 0.0
    %926 = vmatprep.mubr.f32.mxu0 0.0
    %v927 = vand.u32 %v58, 4294901760
    %v928 = vsub.f32 %v58, %v927
    %v929 = vand.u32 %v928, 4294901760
    %930 = vmatmul.mubr.f32.gmra.mrb[0].mxu0 %v929
    %v931 = vpop.f32.mrb[0].mxu0
    %v932 = vadd.f32 %v850, %v931
    %v933 = vpop.f32.mrb[0].mxu0
    %934 = vmatprep.mubr.f32.mxu0 0.0
    %v935 = vand.u32 %v61, 4294901760
    %v936 = vsub.f32 %v61, %v935
    %v937 = vand.u32 %v936, 4294901760
    %938 = vmatmul.mubr.f32.gmra.mrb[0].mxu0 %v937
    %v939 = vpop.f32.mrb[0].mxu0
    %v940 = vadd.f32 %v857, %v939
    %v941 = vpop.f32.mrb[0].mxu0
    %942 = vdwg.mxu0
    %943 = vmatprep.subr.mxu0 0.0
    %v944 = vand.u32 %v52, 4294901760
    %v945 = vsub.f32 %v52, %v944
    %v946 = vand.u32 %v945, 4294901760
    %947 = vmatpush1.msra.mxu0 %v946
    %948 = vmatprep.subr.mxu0 0.0
    %v949 = vand.u32 %v55, 4294901760
    %v950 = vsub.f32 %v55, %v949
    %v951 = vand.u32 %v950, 4294901760
    %952 = vmatpush1.msra.mxu0 %v951
    %953 = vmatprep.subr.mxu0 0.0
    %954 = vmatpush1.msra.mxu0 0.0
    %955 = vmatprep.subr.mxu0 0.0
    %956 = vmatpush1.msra.mxu0 0.0
    %957 = vmatprep.subr.mxu0 0.0
    %958 = vmatpush1.msra.mxu0 0.0
    %959 = vmatprep.subr.mxu0 0.0
    %960 = vmatpush1.msra.mxu0 0.0
    %961 = vmatprep.subr.mxu0 0.0
    %962 = vmatpush1.msra.mxu0 0.0
    %963 = vmatprep.subr.mxu0 0.0
    %964 = vmatpush1.msra.mxu0 0.0
    %965 = vmatprep.subr.mxu0 0.0
    %966 = vmatpush1.msra.mxu0 0.0
    %967 = vmatprep.subr.mxu0 0.0
    %968 = vmatpush1.msra.mxu0 0.0
    %969 = vmatprep.subr.mxu0 0.0
    %970 = vmatpush1.msra.mxu0 0.0
    %971 = vmatprep.subr.mxu0 0.0
    %972 = vmatpush1.msra.mxu0 0.0
    %973 = vmatprep.subr.mxu0 0.0
    %974 = vmatpush1.msra.mxu0 0.0
    %975 = vmatprep.subr.mxu0 0.0
    %976 = vmatpush1.msra.mxu0 0.0
    %977 = vmatprep.subr.mxu0 0.0
    %978 = vmatpush1.msra.mxu0 0.0
    %979 = vmatprep.subr.mxu0 0.0
    %980 = vmatpush1.msra.mxu0 0.0
    %981 = vmatprep.subr.mxu0 0.0
    %982 = vmatpush1.msra.mxu0 0.0
    %983 = vmatprep.subr.mxu0 0.0
    %984 = vmatpush1.msra.mxu0 0.0
    %985 = vmatprep.subr.mxu0 0.0
    %986 = vmatpush1.msra.mxu0 0.0
    %987 = vmatprep.subr.mxu0 0.0
    %988 = vmatpush1.msra.mxu0 0.0
    %989 = vmatprep.subr.mxu0 0.0
    %990 = vmatpush1.msra.mxu0 0.0
    %991 = vmatprep.subr.mxu0 0.0
    %992 = vmatpush1.msra.mxu0 0.0
    %993 = vmatprep.subr.mxu0 0.0
    %994 = vmatpush1.msra.mxu0 0.0
    %995 = vmatprep.subr.mxu0 0.0
    %996 = vmatpush1.msra.mxu0 0.0
    %997 = vmatprep.subr.mxu0 0.0
    %998 = vmatpush1.msra.mxu0 0.0
    %999 = vmatprep.subr.mxu0 0.0
    %1000 = vmatpush1.msra.mxu0 0.0
    %1001 = vmatprep.subr.mxu0 0.0
    %1002 = vmatpush1.msra.mxu0 0.0
    %1003 = vmatprep.subr.mxu0 0.0
    %1004 = vmatpush1.msra.mxu0 0.0
    %1005 = vmatprep.subr.mxu0 0.0
    %1006 = vmatpush1.msra.mxu0 0.0
    %1007 = vmatprep.subr.mxu0 0.0
    %1008 = vmatpush1.msra.mxu0 0.0
    %1009 = vmatprep.subr.mxu0 0.0
    %1010 = vmatpush1.msra.mxu0 0.0
    %1011 = vmatprep.subr.mxu0 0.0
    %1012 = vmatpush1.msra.mxu0 0.0
    %1013 = vmatprep.mubr.f32.mxu0 0.0
    %v1014 = vand.u32 %v58, 4294901760
    %1015 = vmatmul.mubr.f32.gmra.mrb[0].mxu0 %v1014
    %v1016 = vpop.f32.mrb[0].mxu0
    %v1017 = vadd.f32 %v932, %v1016
    %v1018 = vpop.f32.mrb[0].mxu0
    %1019 = vmatprep.mubr.f32.mxu0 0.0
    %v1020 = vand.u32 %v61, 4294901760
    %1021 = vmatmul.mubr.f32.gmra.mrb[0].mxu0 %v1020
    %v1022 = vpop.f32.mrb[0].mxu0
    %v1023 = vadd.f32 %v940, %v1022
    %v1024 = vpop.f32.mrb[0].mxu0
    %1025 = vdwg.mxu0
    %1026 = vmatprep.subr.mxu0 0.0
    %v1027 = vand.u32 %v52, 4294901760
    %1028 = vmatpush1.msra.mxu0 %v1027
    %1029 = vmatprep.subr.mxu0 0.0
    %v1030 = vand.u32 %v55, 4294901760
    %1031 = vmatpush1.msra.mxu0 %v1030
    %1032 = vmatprep.subr.mxu0 0.0
    %1033 = vmatpush1.msra.mxu0 0.0
    %1034 = vmatprep.subr.mxu0 0.0
    %1035 = vmatpush1.msra.mxu0 0.0
    %1036 = vmatprep.subr.mxu0 0.0
    %1037 = vmatpush1.msra.mxu0 0.0
    %1038 = vmatprep.subr.mxu0 0.0
    %1039 = vmatpush1.msra.mxu0 0.0
    %1040 = vmatprep.subr.mxu0 0.0
    %1041 = vmatpush1.msra.mxu0 0.0
    %1042 = vmatprep.subr.mxu0 0.0
    %1043 = vmatpush1.msra.mxu0 0.0
    %1044 = vmatprep.subr.mxu0 0.0
    %1045 = vmatpush1.msra.mxu0 0.0
    %1046 = vmatprep.subr.mxu0 0.0
    %1047 = vmatpush1.msra.mxu0 0.0
    %1048 = vmatprep.subr.mxu0 0.0
    %1049 = vmatpush1.msra.mxu0 0.0
    %1050 = vmatprep.subr.mxu0 0.0
    %1051 = vmatpush1.msra.mxu0 0.0
    %1052 = vmatprep.subr.mxu0 0.0
    %1053 = vmatpush1.msra.mxu0 0.0
    %1054 = vmatprep.subr.mxu0 0.0
    %1055 = vmatpush1.msra.mxu0 0.0
    %1056 = vmatprep.subr.mxu0 0.0
    %1057 = vmatpush1.msra.mxu0 0.0
    %1058 = vmatprep.subr.mxu0 0.0
    %1059 = vmatpush1.msra.mxu0 0.0
    %1060 = vmatprep.subr.mxu0 0.0
    %1061 = vmatpush1.msra.mxu0 0.0
    %1062 = vmatprep.subr.mxu0 0.0
    %1063 = vmatpush1.msra.mxu0 0.0
    %1064 = vmatprep.subr.mxu0 0.0
    %1065 = vmatpush1.msra.mxu0 0.0
    %1066 = vmatprep.subr.mxu0 0.0
    %1067 = vmatpush1.msra.mxu0 0.0
    %1068 = vmatprep.subr.mxu0 0.0
    %1069 = vmatpush1.msra.mxu0 0.0
    %1070 = vmatprep.subr.mxu0 0.0
    %1071 = vmatpush1.msra.mxu0 0.0
    %1072 = vmatprep.subr.mxu0 0.0
    %1073 = vmatpush1.msra.mxu0 0.0
    %1074 = vmatprep.subr.mxu0 0.0
    %1075 = vmatpush1.msra.mxu0 0.0
    %1076 = vmatprep.subr.mxu0 0.0
    %1077 = vmatpush1.msra.mxu0 0.0
    %1078 = vmatprep.subr.mxu0 0.0
    %1079 = vmatpush1.msra.mxu0 0.0
    %1080 = vmatprep.subr.mxu0 0.0
    %1081 = vmatpush1.msra.mxu0 0.0
    %1082 = vmatprep.subr.mxu0 0.0
    %1083 = vmatpush1.msra.mxu0 0.0
    %1084 = vmatprep.subr.mxu0 0.0
    %1085 = vmatpush1.msra.mxu0 0.0
    %1086 = vmatprep.subr.mxu0 0.0
    %1087 = vmatpush1.msra.mxu0 0.0
    %1088 = vmatprep.subr.mxu0 0.0
    %1089 = vmatpush1.msra.mxu0 0.0
    %1090 = vmatprep.subr.mxu0 0.0
    %1091 = vmatpush1.msra.mxu0 0.0
    %1092 = vmatprep.mubr.f32.mxu0 0.0
    %v1093 = vand.u32 %v58, 4294901760
    %1094 = vmatmul.mubr.f32.gmra.mrb[0].mxu0 %v1093
    %v1095 = vpop.f32.mrb[0].mxu0
    %v1096 = vadd.f32 %v1017, %v1095
    %v1097 = vpop.f32.mrb[0].mxu0
    %1098 = vmatprep.mubr.f32.mxu0 0.0
    %v1099 = vand.u32 %v61, 4294901760
    %1100 = vmatmul.mubr.f32.gmra.mrb[0].mxu0 %v1099
    %v1101 = vpop.f32.mrb[0].mxu0
    %v1102 = vadd.f32 %v1023, %v1101
    %v1103 = vpop.f32.mrb[0].mxu0
    %1104 = vdwg.mxu0
    %1105 = vst [vmem:[#allocation5] sm:$0xff] %v592
    %1106 = vst [vmem:[#allocation5 + $0x8] sm:$0xff] %v594
    %1107 = vst [vmem:[#allocation5 + $0x10] sm:$0xff] %v1096
    %1108 = vst [vmem:[#allocation5 + $0x18] sm:$0xff] %v599
    %1109 = vst [vmem:[#allocation5 + $0x20] sm:$0xff] %v601
    %1110 = vst [vmem:[#allocation5 + $0x28] sm:$0xff] %v1102
    // Predicated region
    $region14: #{mapping_encoding_forward.1} parent=1 // pred_check
      _
    $region15: #{mapping_encoding_forward.1} parent=1 // pred_check_branch
      %1112 = sbr.rel (0) target = $region17
    $region16: #{mapping_encoding_forward.1} parent=1 // pred_region
      %s1114 = ssub.s32 768, 768
      %1115 = vsyncadd [#allocation4], %s1114
      %s1116 = sshll.u32 [#allocation5], 4
      %s1117 = int_to_ptr.vmem [resolvable:$true] %s1116
      %1122 = dma.vmem_to_hbm [thread:$0]  %s1117, 768, %s2, [#allocation4], 384, 384, 24
    $region17: #{mapping_encoding_forward.1} parent=1 // pred_fallthru
      _
    // Predicated region
    $region18: #{mapping_encoding_forward.1} parent=1 // pred_check
      _
    $region19: #{mapping_encoding_forward.1} parent=1 // pred_check_branch
      %1124 = sbr.rel (0) target = $region21
    $region20: #{mapping_encoding_forward.1} parent=1 // pred_region
      %1125 = dma.done [#allocation4], 768
    $region21: #{mapping_encoding_forward.1} parent=1 // pred_fallthru
      _
    %1126 = vsyncpa [#allocation3], 1
    %1127 = vsyncpa [#allocation4], 1

</llo_original>
